<compile_context>
chip_gen: v7x
topology: tpu7x:2x2x1
jax: 0.10.0
libtpu: 0.0.40
codegen_flags: <defaults>
</compile_context>

<pallas_src>
import functools
import math

import jax
import jax.numpy as jnp
from jax.experimental import pallas as pl
from jax.experimental.pallas import tpu as pltpu


KERNEL_SIZE = 5
INIT_SIGMA = 4.0


# ----------------------------------------------------------------------------
# Parameter glue: Gaussian weights and banded "conv as matmul" matrices.
# ----------------------------------------------------------------------------
def gaussian_kernel_2d(sigma, size=KERNEL_SIZE):
    """Same construction as the PyTorch module's gaussian_kernel()."""
    coords = jnp.arange(size, dtype=jnp.float32) - float(size // 2)
    yy = coords[:, None] ** 2
    xx = coords[None, :] ** 2
    k = (1.0 / (2.0 * jnp.pi * sigma ** 2)) * jnp.exp(-(xx + yy) / (2.0 * sigma ** 2))
    return (k / jnp.sum(k)).astype(jnp.float32)


def gaussian_kernel_1d(sigma, size=KERNEL_SIZE):
    """Normalized 1-D factor: outer(g1d, g1d) == gaussian_kernel_2d exactly."""
    coords = jnp.arange(size, dtype=jnp.float32) - float(size // 2)
    g = jnp.exp(-(coords ** 2) / (2.0 * sigma ** 2))
    return (g / jnp.sum(g)).astype(jnp.float32)


def conv_matrix_left(g, n):
    """A[y, i] = g[i - y + pad]  =>  (A @ M)[y] = sum_k g[k] * M[y + k - pad].

    Out-of-range taps are zero entries, reproducing conv2d's zero padding
    without materializing a padded tensor."""
    ksize = g.shape[0]
    pad = ksize // 2
    y = jnp.arange(n)[:, None]
    i = jnp.arange(n)[None, :]
    k = i - y + pad
    valid = (k >= 0) & (k < ksize)
    return jnp.where(valid, g[jnp.clip(k, 0, ksize - 1)], 0.0).astype(jnp.float32)


# ----------------------------------------------------------------------------
# Pallas kernel: one (H, Cb*W) lane-dense column block; two 2-D MXU matmuls.
# ----------------------------------------------------------------------------
def _gauss_block_kernel(av_ref, bh_ref, x_ref, o_ref):
    # av_ref: (H, H)        vertical band matrix, bf16   (constant across grid)
    # bh_ref: (CbW, CbW)    block-diag horizontal matrix, bf16 (constant)
    # x_ref : (H, CbW)      input column block, f32
    # o_ref : (H, CbW)      output column block, f32
    xb = x_ref[...].astype(jnp.bfloat16)
    # Vertical pass: contract over H. Single 2-D matmul, N = Cb*W lane-dense.
    v = jnp.dot(av_ref[...], xb, preferred_element_type=jnp.float32)
    # Horizontal pass: block-diagonal band matrix => per-channel contract over W.
    o = jnp.dot(v.astype(jnp.bfloat16), bh_ref[...],
                preferred_element_type=jnp.float32)
    o_ref[...] = o.astype(o_ref.dtype)


def _choose_channel_block(nc, h, w, budget_bytes=8 * 1024 * 1024):
    """Channels per block.

    Keeps the block's last dim (cb*w) a multiple of 128 lanes (or the full
    axis), stays near the VMEM budget for in+out blocks, and leaves >= 2 grid
    steps when possible so both v7x TensorCores get work."""
    per_channel = 2 * h * w * 4                    # f32 in + out block, per channel
    max_cb = max(1, budget_bytes // per_channel)
    cb0 = 128 // math.gcd(w, 128)                  # smallest cb with (cb*w) % 128 == 0
    if cb0 >= nc:
        return nc                                  # one full (lane-legal) block
    cb = max(cb0, (min(max_cb, nc) // cb0) * cb0)  # largest lane-dense cb in budget
    if nc >= 2 * cb0:                              # keep >= 2 grid steps (megacore)
        cb = min(cb, max(cb0, ((nc // 2) // cb0) * cb0))
    return cb


@functools.partial(jax.jit, static_argnames=("kernel_size",))
def learnable_gaussian_filter(img, sigma, kernel_size=KERNEL_SIZE):
    """img: (N, C, H, W). Returns the depthwise-Gaussian-filtered image (f32)."""
    n, c, h, w = img.shape
    nc = n * c
    x = img.astype(jnp.float32).reshape(nc, h, w)

    g1d = gaussian_kernel_1d(sigma, kernel_size)
    a_v = conv_matrix_left(g1d, h)        # (H, H), left-multiply form
    a_h = conv_matrix_left(g1d, w).T      # (W, W), right-multiply form

    cb = _choose_channel_block(nc, h, w)
    nblk = -(-nc // cb)                   # cdiv: no exact-divisor requirement
    nc_pad = nblk * cb
    if nc_pad != nc:
        x = jnp.pad(x, ((0, nc_pad - nc), (0, 0), (0, 0)))  # zero channels, sliced off

    # Lane-dense layout: columns indexed by (channel, x)  ->  (H, NCpad*W).
    x2 = jnp.transpose(x, (1, 0, 2)).reshape(h, nc_pad * w)
    cbw = cb * w

    # Band matrices fed to the MXU as bf16 (single-pass matmuls, f32 accumulate).
    a_v_b = a_v.astype(jnp.bfloat16)
    b_h_b = jnp.kron(jnp.eye(cb, dtype=jnp.float32), a_h).astype(jnp.bfloat16)

    flops = 2 * h * nc_pad * w * (h + cbw)
    bytes_accessed = 4 * 2 * h * nc_pad * w + 2 * (h * h + cbw * cbw)

    out2 = pl.pallas_call(
        _gauss_block_kernel,
        out_shape=jax.ShapeDtypeStruct((h, nc_pad * w), jnp.float32),
        grid=(nblk,),
        in_specs=[
            pl.BlockSpec((h, h), lambda i: (0, 0)),        # A_v   (constant block)
            pl.BlockSpec((cbw, cbw), lambda i: (0, 0)),    # B_h   (constant block)
            pl.BlockSpec((h, cbw), lambda i: (0, i)),      # input column block
        ],
        out_specs=pl.BlockSpec((h, cbw), lambda i: (0, i)),
        compiler_params=pltpu.CompilerParams(
            dimension_semantics=("parallel",),
            vmem_limit_bytes=48 * 1024 * 1024,
        ),
        cost_estimate=pl.CostEstimate(
            flops=flops, transcendentals=0, bytes_accessed=bytes_accessed),
    )(a_v_b, b_h_b, x2)

    out = out2.reshape(h, nc_pad, w).transpose(1, 0, 2)[:nc]
    return out.reshape(n, c, h, w)


# ----------------------------------------------------------------------------
# Pure-JAX reference (PyTorch-equivalent math, full f32) for a sanity check.
# ----------------------------------------------------------------------------
def _reference(img, sigma, kernel_size=KERNEL_SIZE):
    n, c, h, w = img.shape
    pad = kernel_size // 2
    k2 = gaussian_kernel_2d(sigma, kernel_size)
    xp = jnp.pad(img.astype(jnp.float32),
                 ((0, 0), (0, 0), (pad, pad), (pad, pad)))
    acc = jnp.zeros((n, c, h, w), jnp.float32)
    for ky in range(kernel_size):
        for kx in range(kernel_size):
            acc = acc + k2[ky, kx] * xp[:, :, ky:ky + h, kx:kx + w]
    return acc


if __name__ == "__main__":
    key = jax.random.PRNGKey(0)
    N, C, H, W = 2, 4, 16, 16
    img = jax.random.normal(key, (N, C, H, W), dtype=jnp.float32)
    sigma = jnp.float32(INIT_SIGMA)  # learnable scalar parameter, deterministic init

    out = learnable_gaussian_filter(img, sigma)
    out = jax.block_until_ready(out)

    ref = _reference(img, sigma)
    assert out.shape == (N, C, H, W)
    # Tolerance sized for bf16 MXU feeds (single-pass matmuls, f32 accumulation);
    # structural bugs (padding / tap errors) would show errors >= ~0.05-0.3.
    assert jnp.allclose(out, ref, atol=5e-2, rtol=5e-2), float(
        jnp.max(jnp.abs(out - ref)))

    print("KERNEL_OK")
</pallas_src>

<mosaic_0001>
module attributes {stable_mosaic.version = 11 : i64} {
  func.func @_gauss_block_kernel(%arg0: i32, %arg1: memref<16x16xbf16, #tpu.memory_space<vmem>>, %arg2: memref<128x128xbf16, #tpu.memory_space<vmem>>, %arg3: memref<16x128xf32, #tpu.memory_space<vmem>>, %arg4: memref<16x128xf32, #tpu.memory_space<vmem>>) attributes {dimension_semantics = [#tpu.dimension_semantics<parallel>], iteration_bounds = array<i64: 1>, scalar_prefetch = 0 : i64, scratch_operands = 0 : i64, tpu.core_type = #tpu.core_type<tc>, window_params = [{pipeline_mode = #tpu.pipeline_mode<synchronous>, transform_indices = @transform_0, window_bounds = array<i64: 16, 16>}, {pipeline_mode = #tpu.pipeline_mode<synchronous>, transform_indices = @transform_1, window_bounds = array<i64: 128, 128>}, {transform_indices = @transform_2, window_bounds = array<i64: 16, 128>}, {transform_indices = @transform_3, window_bounds = array<i64: 16, 128>}]} {
    %c0 = arith.constant 0 : index
    %c0_0 = arith.constant 0 : index
    %0 = vector.load %arg3[%c0, %c0_0] : memref<16x128xf32, #tpu.memory_space<vmem>>, vector<16x128xf32>
    %1 = arith.truncf %0 : vector<16x128xf32> to vector<16x128xbf16>
    %c0_1 = arith.constant 0 : index
    %c0_2 = arith.constant 0 : index
    %2 = vector.load %arg1[%c0_1, %c0_2] : memref<16x16xbf16, #tpu.memory_space<vmem>>, vector<16x16xbf16>
    %cst = arith.constant dense<0.000000e+00> : vector<16x128xf32>
    %3 = tpu.matmul %2, %1, %cst {dimension_numbers = #tpu.dot_dimension_numbers<[1], [0], [0], [1], [0, 0, 1, 1], [], []>} : vector<16x16xbf16>, vector<16x128xbf16>, vector<16x128xf32> -> vector<16x128xf32>
    %4 = arith.truncf %3 : vector<16x128xf32> to vector<16x128xbf16>
    %c0_3 = arith.constant 0 : index
    %c0_4 = arith.constant 0 : index
    %5 = vector.load %arg2[%c0_3, %c0_4] : memref<128x128xbf16, #tpu.memory_space<vmem>>, vector<128x128xbf16>
    %cst_5 = arith.constant dense<0.000000e+00> : vector<16x128xf32>
    %6 = tpu.matmul %4, %5, %cst_5 {dimension_numbers = #tpu.dot_dimension_numbers<[1], [0], [0], [1], [0, 0, 1, 1], [], []>} : vector<16x128xbf16>, vector<128x128xbf16>, vector<16x128xf32> -> vector<16x128xf32>
    %c0_6 = arith.constant 0 : index
    %c0_7 = arith.constant 0 : index
    %7 = vector.load %arg4[%c0_6, %c0_7] : memref<16x128xf32, #tpu.memory_space<vmem>>, vector<16x128xf32>
    tpu.vector_store %arg4[%c0_6, %c0_7], %6 {strides = array<i32>} : memref<16x128xf32, #tpu.memory_space<vmem>>, vector<16x128xf32>,
    return
  }
  func.func @transform_0(%arg0: i32) -> (i32, i32) {
    %c0_i32 = arith.constant 0 : i32
    %c0_i32_0 = arith.constant 0 : i32
    %c0_i32_1 = arith.constant 0 : i32
    return %c0_i32, %c0_i32_0 : i32, i32
  }
  func.func @transform_1(%arg0: i32) -> (i32, i32) {
    %c0_i32 = arith.constant 0 : i32
    %c0_i32_0 = arith.constant 0 : i32
    %c0_i32_1 = arith.constant 0 : i32
    return %c0_i32, %c0_i32_0 : i32, i32
  }
  func.func @transform_2(%arg0: i32) -> (i32, i32) {
    %c0_i32 = arith.constant 0 : i32
    %c0_i32_0 = arith.constant 0 : i32
    return %c0_i32, %arg0 : i32, i32
  }
  func.func @transform_3(%arg0: i32) -> (i32, i32) {
    %c0_i32 = arith.constant 0 : i32
    %c0_i32_0 = arith.constant 0 : i32
    return %c0_i32, %arg0 : i32, i32
  }
}

</mosaic_0001>

<llo_original>
// kernel: learnable_gaussian_filter.1
$region0: #{learnable_gaussian_filter.1}
  #allocation0 [shape = 'u32[]', space=smem, size = 0x4, offset = 0x4, fixed_abs, tag = 'smem constant byte address 0x4 - core index']
  #allocation1 [shape = 'u32[144,128]{1,0:T(1,128)}', space=vmem, size = 0x12000, scoped, tag = 'internal scratch']
  %s0 = inlined_call_operand.vmem [shape: bf16[16,16], index: 0, kind: input, shape index: {}]
  %s1 = inlined_call_operand.vmem [shape: bf16[128,128], index: 1, kind: input, shape index: {}]
  %s2 = inlined_call_operand.vmem [shape: f32[16,128], index: 2, kind: input, shape index: {}]
  %s3 = inlined_call_operand.vmem [shape: f32[16,128], index: 3, kind: output, shape index: {}]
  %s4 = sld [smem:[#allocation0]]
  $region22: #{learnable_gaussian_filter.1} parent=0
    _
  %s6 = ssub.s32 1, %s4
  %s7 = scalar_select 0, %s6, %s4
  // Predicated region
  $region2: #{learnable_gaussian_filter.1} parent=0 // pred_check
    _
  $region3: #{learnable_gaussian_filter.1} parent=0 // pred_check_branch
    %9 = sbr.rel (0) target = $region5
  $region4: #{learnable_gaussian_filter.1} parent=0 // pred_region
    _
  $region5: #{learnable_gaussian_filter.1} parent=0 // pred_fallthru
    _
  // Predicated region
  $region6: #{learnable_gaussian_filter.1} parent=0 // pred_check
    _
  $region7: #{learnable_gaussian_filter.1} parent=0 // pred_check_branch
    %11 = sbr.rel (0) target = $region9
  $region8: #{learnable_gaussian_filter.1} parent=0 // pred_region
    _
  $region9: #{learnable_gaussian_filter.1} parent=0 // pred_fallthru
    _
  // Predicated region
  $region10: #{learnable_gaussian_filter.1} parent=0 // pred_check
    _
  $region11: #{learnable_gaussian_filter.1} parent=0 // pred_check_branch
    %13 = sbr.rel (0) target = $region13
  $region12: #{learnable_gaussian_filter.1} parent=0 // pred_region
    _
  $region13: #{learnable_gaussian_filter.1} parent=0 // pred_fallthru
    _
  %v15 = vld [vmem:[%s2] sm:$0xff]
  %v16 = vld [vmem:[%s2 + $0x8] sm:$0xff]
  %v17 = vpack.c.bf16 %v16, %v15
  %v18 = vld [vmem:[%s0] sm:$0xf]
  %v19 = vld [vmem:[%s0 + $0x4] sm:$0xf]
  %v22 = vunpack.c.l.b16 %v18
  %v23 = vunpack.c.l.b16 %v19
  %v24 = vpack.c.b16 %v23, %v22
  %vm25 = vcmask 130048
  %v27 = vsel %vm25, %v24, 0
  %29 = vmatprep.subr.bf16.mxu0 0
  %30 = vmatpush1.bf16.msra.mxu0 %v17
  %31 = vmatprep.subr.bf16.mxu0 0
  %32 = vmatpush1.bf16.msra.mxu0 0
  %33 = vmatprep.subr.bf16.mxu0 0
  %34 = vmatpush1.bf16.msra.mxu0 0
  %35 = vmatprep.subr.bf16.mxu0 0
  %36 = vmatpush1.bf16.msra.mxu0 0
  %37 = vmatprep.subr.bf16.mxu0 0
  %38 = vmatpush1.bf16.msra.mxu0 0
  %39 = vmatprep.subr.bf16.mxu0 0
  %40 = vmatpush1.bf16.msra.mxu0 0
  %41 = vmatprep.subr.bf16.mxu0 0
  %42 = vmatpush1.bf16.msra.mxu0 0
  %43 = vmatprep.subr.bf16.mxu0 0
  %44 = vmatpush1.bf16.msra.mxu0 0
  %45 = vmatprep.subr.bf16.mxu0 0
  %46 = vmatpush1.bf16.msra.mxu0 0
  %47 = vmatprep.subr.bf16.mxu0 0
  %48 = vmatpush1.bf16.msra.mxu0 0
  %49 = vmatprep.subr.bf16.mxu0 0
  %50 = vmatpush1.bf16.msra.mxu0 0
  %51 = vmatprep.subr.bf16.mxu0 0
  %52 = vmatpush1.bf16.msra.mxu0 0
  %53 = vmatprep.subr.bf16.mxu0 0
  %54 = vmatpush1.bf16.msra.mxu0 0
  %55 = vmatprep.subr.bf16.mxu0 0
  %56 = vmatpush1.bf16.msra.mxu0 0
  %57 = vmatprep.subr.bf16.mxu0 0
  %58 = vmatpush1.bf16.msra.mxu0 0
  %59 = vmatprep.subr.bf16.mxu0 0
  %60 = vmatpush1.bf16.msra.mxu0 0
  %61 = vmatprep.mubr.bf16.mxu0 0
  %62 = vmatmul.mubr.bf16.gmra.mrb[0].mxu0 %v27
  %v63 = vpop.f32.mrb[0].mxu0
  %v64 = vadd.f32 0.0, %v63
  %v65 = vpop.f32.mrb[0].mxu0
  %v66 = vpop.f32.mrb[0].mxu0
  %v67 = vadd.f32 0.0, %v66
  %v68 = vpop.f32.mrb[0].mxu0
  %69 = vdwg.mxu0
  %v70 = vpack.c.bf16 %v67, %v64
  %v71 = vld [vmem:[%s1] sm:$0xf]
  %v72 = vld [vmem:[%s1 + $0x4] sm:$0xf]
  %v73 = vld [vmem:[%s1 + $0x8] sm:$0xf]
  %v74 = vld [vmem:[%s1 + $0xc] sm:$0xf]
  %v75 = vld [vmem:[%s1 + $0x10] sm:$0xf]
  %v76 = vld [vmem:[%s1 + $0x14] sm:$0xf]
  %v77 = vld [vmem:[%s1 + $0x18] sm:$0xf]
  %v78 = vld [vmem:[%s1 + $0x1c] sm:$0xf]
  %v79 = vld [vmem:[%s1 + $0x20] sm:$0xf]
  %v80 = vld [vmem:[%s1 + $0x24] sm:$0xf]
  %v81 = vld [vmem:[%s1 + $0x28] sm:$0xf]
  %v82 = vld [vmem:[%s1 + $0x2c] sm:$0xf]
  %v83 = vld [vmem:[%s1 + $0x30] sm:$0xf]
  %v84 = vld [vmem:[%s1 + $0x34] sm:$0xf]
  %v85 = vld [vmem:[%s1 + $0x38] sm:$0xf]
  %v86 = vld [vmem:[%s1 + $0x3c] sm:$0xf]
  %v103 = vunpack.c.l.b16 %v71
  %v104 = vunpack.c.l.b16 %v72
  %v105 = vunpack.c.l.b16 %v73
  %v106 = vunpack.c.l.b16 %v74
  %v107 = vunpack.c.l.b16 %v75
  %v108 = vunpack.c.l.b16 %v76
  %v109 = vunpack.c.l.b16 %v77
  %v110 = vunpack.c.l.b16 %v78
  %v111 = vunpack.c.l.b16 %v79
  %v112 = vunpack.c.l.b16 %v80
  %v113 = vunpack.c.l.b16 %v81
  %v114 = vunpack.c.l.b16 %v82
  %v115 = vunpack.c.l.b16 %v83
  %v116 = vunpack.c.l.b16 %v84
  %v117 = vunpack.c.l.b16 %v85
  %v118 = vunpack.c.l.b16 %v86
  %v119 = vpack.c.b16 %v104, %v103
  %v120 = vpack.c.b16 %v106, %v105
  %v121 = vpack.c.b16 %v108, %v107
  %v122 = vpack.c.b16 %v110, %v109
  %v123 = vpack.c.b16 %v112, %v111
  %v124 = vpack.c.b16 %v114, %v113
  %v125 = vpack.c.b16 %v116, %v115
  %v126 = vpack.c.b16 %v118, %v117
  %135 = vmatprep.subr.bf16.mxu0 0
  %136 = vmatpush1.bf16.msra.mxu0 %v119
  %137 = vmatprep.subr.bf16.mxu0 0
  %138 = vmatpush1.bf16.msra.mxu0 %v120
  %139 = vmatprep.subr.bf16.mxu0 0
  %140 = vmatpush1.bf16.msra.mxu0 %v121
  %141 = vmatprep.subr.bf16.mxu0 0
  %142 = vmatpush1.bf16.msra.mxu0 %v122
  %143 = vmatprep.subr.bf16.mxu0 0
  %144 = vmatpush1.bf16.msra.mxu0 %v123
  %145 = vmatprep.subr.bf16.mxu0 0
  %146 = vmatpush1.bf16.msra.mxu0 %v124
  %147 = vmatprep.subr.bf16.mxu0 0
  %148 = vmatpush1.bf16.msra.mxu0 %v125
  %149 = vmatprep.subr.bf16.mxu0 0
  %150 = vmatpush1.bf16.msra.mxu0 %v126
  %151 = vmatprep.subr.bf16.mxu0 0
  %152 = vmatpush1.bf16.msra.mxu0 0
  %153 = vmatprep.subr.bf16.mxu0 0
  %154 = vmatpush1.bf16.msra.mxu0 0
  %155 = vmatprep.subr.bf16.mxu0 0
  %156 = vmatpush1.bf16.msra.mxu0 0
  %157 = vmatprep.subr.bf16.mxu0 0
  %158 = vmatpush1.bf16.msra.mxu0 0
  %159 = vmatprep.subr.bf16.mxu0 0
  %160 = vmatpush1.bf16.msra.mxu0 0
  %161 = vmatprep.subr.bf16.mxu0 0
  %162 = vmatpush1.bf16.msra.mxu0 0
  %163 = vmatprep.subr.bf16.mxu0 0
  %164 = vmatpush1.bf16.msra.mxu0 0
  %165 = vmatprep.subr.bf16.mxu0 0
  %166 = vmatpush1.bf16.msra.mxu0 0
  %167 = vmatprep.mubr.bf16.mxu0 0
  %168 = vmatmul.mubr.bf16.gmra.mrb[0].mxu0 %v70
  %v169 = vpop.f32.mrb[0].mxu0
  %v170 = vadd.f32 0.0, %v169
  %v171 = vpop.f32.mrb[0].mxu0
  %v172 = vpop.f32.mrb[0].mxu0
  %v173 = vadd.f32 0.0, %v172
  %v174 = vpop.f32.mrb[0].mxu0
  %175 = vdwg.mxu0
  %176 = vst [vmem:[%s3] sm:$0xff] %v170
  %177 = vst [vmem:[%s3 + $0x8] sm:$0xff] %v173
  // Predicated region
  $region14: #{learnable_gaussian_filter.1} parent=0 // pred_check
    _
  $region15: #{learnable_gaussian_filter.1} parent=0 // pred_check_branch
    %179 = sbr.rel (0) target = $region17
  $region16: #{learnable_gaussian_filter.1} parent=0 // pred_region
    _
  $region17: #{learnable_gaussian_filter.1} parent=0 // pred_fallthru
    _
  // Predicated region
  $region18: #{learnable_gaussian_filter.1} parent=0 // pred_check
    _
  $region19: #{learnable_gaussian_filter.1} parent=0 // pred_check_branch
    %181 = sbr.rel (0) target = $region21
  $region20: #{learnable_gaussian_filter.1} parent=0 // pred_region
    _
  $region21: #{learnable_gaussian_filter.1} parent=0 // pred_fallthru
    _

</llo_original>
